<compile_context>
chip_gen: v6e
topology: v6e:2x2x1
jax: 0.10.0
libtpu: 0.0.40
codegen_flags: <defaults>
</compile_context>

<pallas_src>
import functools

import jax
import jax.numpy as jnp
from jax.experimental import pallas as pl
from jax.experimental.pallas import tpu as pltpu


def _haar_ll_kernel(wf_ref, x_ref, o_ref):
    # x_ref : (TR, G*2L)   rows = G two-row strips of the input image(s)
    # wf_ref: (G*2L, G*Lh) constant block-diagonal Haar-LL fold matrix
    # o_ref : (TR, G*Lh)
    o_ref[...] = jnp.dot(
        x_ref[...], wf_ref[...],
        preferred_element_type=jnp.float32).astype(o_ref.dtype)


def haar_ll_pallas(x):
    """Low-pass (LL) band of a single-level orthonormal 2x2 Haar transform.

    x: (B, L, L) -> (B, L//2, L//2)
    """
    B, L, L2 = x.shape
    assert L == L2 and L % 2 == 0, "expected square images with even side"
    Lh = L // 2
    dtype = x.dtype
    itemsize = jnp.dtype(dtype).itemsize

    # --- group G row-strips per kernel row so the output lane dim >= 128 ----
    G = 1
    target = max(1, 128 // Lh)
    while G * 2 <= target and (B * Lh) % (G * 2) == 0:
        G *= 2

    R = (B * Lh) // G      # kernel rows (one per G row-strips)
    Kd = G * 2 * L         # contraction dim  (input lane dim)
    Nd = G * Lh            # output lane dim

    # --- constant Haar-LL fold matrix ---------------------------------------
    # base[c, j] = 0.5 iff (c mod L) // 2 == j   (covers x00, x01, x10, x11)
    c_idx = jnp.arange(2 * L)[:, None]
    j_idx = jnp.arange(Lh)[None, :]
    base = jnp.where((c_idx % L) // 2 == j_idx,
                     jnp.asarray(0.5, dtype), jnp.asarray(0.0, dtype))
    wf = base if G == 1 else jnp.kron(jnp.eye(G, dtype=dtype), base)

    # --- free (row-major) reinterpretation of x: no HBM copy ----------------
    x2 = x.reshape(R, Kd)

    # --- rows-per-block: largest halving of R fitting the VMEM budget -------
    wf_bytes = Kd * Nd * itemsize
    avail = max(2 * 1024 * 1024, 40 * 1024 * 1024 - 2 * wf_bytes)
    x_budget = int(avail / 2.5)            # 2*x_blk + 2*out_blk (= x_blk/4)
    row_bytes = Kd * itemsize
    TR = R
    while TR % 2 == 0 and TR > 8 and TR * row_bytes > x_budget:
        TR //= 2
    if TR != R and TR % 8 != 0:            # keep sublane-aligned block shapes
        TR = R

    grid = (R // TR,)

    out = pl.pallas_call(
        _haar_ll_kernel,
        out_shape=jax.ShapeDtypeStruct((R, Nd), dtype),
        grid=grid,
        in_specs=[
            pl.BlockSpec((Kd, Nd), lambda i: (0, 0)),   # fold matrix, resident
            pl.BlockSpec((TR, Kd), lambda i: (i, 0)),   # input row-strips
        ],
        out_specs=pl.BlockSpec((TR, Nd), lambda i: (i, 0)),
        compiler_params=pltpu.CompilerParams(
            dimension_semantics=("parallel",),
            vmem_limit_bytes=48 * 1024 * 1024),
    )(wf, x2)

    # Free reshape: (B*Lh/G, G*Lh) is exactly row-major (B, Lh, Lh).
    return out.reshape(B, Lh, Lh)


class HaarW:
    """Deterministic orthonormal 2x2 Haar wavelet operator (the `W` object)."""

    def Wav_2d_low(self, x):
        # LL band only: decompose_free consumes Wav_2d(x)[0] and discards the
        # three high-frequency bands, so they are intentionally not computed.
        return haar_ll_pallas(x)


def decompose_free_forward(W, x):
    """Pallas/JAX port of decompose_free.forward (same output semantics).

    Original: x_wav = W.Wav_2d(x)[0][:, None]; return ((x_wav,), x_wav)
    """
    x_wav = W.Wav_2d_low(x)[:, None]       # (B, 1, L/2, L/2)
    return ((x_wav,), x_wav)


if __name__ == "__main__":
    key = jax.random.PRNGKey(0)
    B, L = 2, 16
    x = jax.random.normal(key, (B, L, L), dtype=jnp.float32)

    W = HaarW()
    fwd = jax.jit(functools.partial(decompose_free_forward, W))
    (nothing_useful,), x_wav = fwd(x)
    jax.block_until_ready(x_wav)

    # Reference: plain-JAX low-pass band of the orthonormal 2x2 Haar bank.
    Lh = L // 2
    xr = x.reshape(B, Lh, 2, Lh, 2)
    ref_low = 0.5 * (xr[:, :, 0, :, 0] + xr[:, :, 0, :, 1] +
                     xr[:, :, 1, :, 0] + xr[:, :, 1, :, 1])[:, None]

    assert x_wav.shape == (B, 1, Lh, Lh)
    assert nothing_useful.shape == (B, 1, Lh, Lh)
    assert jnp.allclose(x_wav, ref_low, atol=1e-5)

    print("KERNEL_OK")
</pallas_src>

<mosaic_0001>
module attributes {stable_mosaic.version = 11 : i64} {
  func.func @_haar_ll_kernel(%arg0: i32, %arg1: memref<512x128xf32, #tpu.memory_space<vmem>>, %arg2: memref<1x512xf32, #tpu.memory_space<vmem>>, %arg3: memref<1x128xf32, #tpu.memory_space<vmem>>) attributes {dimension_semantics = [#tpu.dimension_semantics<parallel>], iteration_bounds = array<i64: 1>, scalar_prefetch = 0 : i64, scratch_operands = 0 : i64, tpu.core_type = #tpu.core_type<tc>, window_params = [{pipeline_mode = #tpu.pipeline_mode<synchronous>, transform_indices = @transform_0, window_bounds = array<i64: 512, 128>}, {transform_indices = @transform_1, window_bounds = array<i64: 1, 512>}, {transform_indices = @transform_2, window_bounds = array<i64: 1, 128>}]} {
    %c0 = arith.constant 0 : index
    %c0_0 = arith.constant 0 : index
    %0 = vector.load %arg2[%c0, %c0_0] : memref<1x512xf32, #tpu.memory_space<vmem>>, vector<1x512xf32>
    %c0_1 = arith.constant 0 : index
    %c0_2 = arith.constant 0 : index
    %1 = vector.load %arg1[%c0_1, %c0_2] : memref<512x128xf32, #tpu.memory_space<vmem>>, vector<512x128xf32>
    %cst = arith.constant dense<0.000000e+00> : vector<1x128xf32>
    %2 = tpu.matmul %0, %1, %cst {dimension_numbers = #tpu.dot_dimension_numbers<[1], [0], [0], [1], [0, 0, 1, 1], [], []>} : vector<1x512xf32>, vector<512x128xf32>, vector<1x128xf32> -> vector<1x128xf32>
    %c0_3 = arith.constant 0 : index
    %c0_4 = arith.constant 0 : index
    %3 = vector.load %arg3[%c0_3, %c0_4] : memref<1x128xf32, #tpu.memory_space<vmem>>, vector<1x128xf32>
    tpu.vector_store %arg3[%c0_3, %c0_4], %2 {strides = array<i32>} : memref<1x128xf32, #tpu.memory_space<vmem>>, vector<1x128xf32>,
    return
  }
  func.func @transform_0(%arg0: i32) -> (i32, i32) {
    %c0_i32 = arith.constant 0 : i32
    %c0_i32_0 = arith.constant 0 : i32
    %c0_i32_1 = arith.constant 0 : i32
    return %c0_i32, %c0_i32_0 : i32, i32
  }
  func.func @transform_1(%arg0: i32) -> (i32, i32) {
    %c0_i32 = arith.constant 0 : i32
    %c0_i32_0 = arith.constant 0 : i32
    return %arg0, %c0_i32 : i32, i32
  }
  func.func @transform_2(%arg0: i32) -> (i32, i32) {
    %c0_i32 = arith.constant 0 : i32
    %c0_i32_0 = arith.constant 0 : i32
    return %arg0, %c0_i32 : i32, i32
  }
}

</mosaic_0001>

<llo_original>
// kernel: decompose_free_forward.1
$region0: #{decompose_free_forward.1}
  #allocation0 [shape = 'u32[]', space=smem, size = 0x4, offset = 0x4, fixed_abs, tag = 'smem constant byte address 0x4 - core index']
  #allocation1 [shape = 'u32[144,128]{1,0:T(1,128)}', space=vmem, size = 0x12000, scoped, tag = 'internal scratch']
  %s0 = inlined_call_operand.vmem [shape: f32[512,128], index: 0, kind: input, shape index: {}]
  %s1 = inlined_call_operand.vmem [shape: f32[1,512], index: 1, kind: input, shape index: {}]
  %s2 = inlined_call_operand.vmem [shape: f32[1,128], index: 2, kind: output, shape index: {}]
  %s3 = sld [smem:[#allocation0]]
  $region18: #{decompose_free_forward.1} parent=0
    _
  %s5 = ssub.s32 1, %s3
  %s6 = scalar_select 0, %s5, %s3
  // Predicated region
  $region2: #{decompose_free_forward.1} parent=0 // pred_check
    _
  $region3: #{decompose_free_forward.1} parent=0 // pred_check_branch
    %8 = sbr.rel (0) target = $region5
  $region4: #{decompose_free_forward.1} parent=0 // pred_region
    _
  $region5: #{decompose_free_forward.1} parent=0 // pred_fallthru
    _
  // Predicated region
  $region6: #{decompose_free_forward.1} parent=0 // pred_check
    _
  $region7: #{decompose_free_forward.1} parent=0 // pred_check_branch
    %10 = sbr.rel (0) target = $region9
  $region8: #{decompose_free_forward.1} parent=0 // pred_region
    _
  $region9: #{decompose_free_forward.1} parent=0 // pred_fallthru
    _
  %v11 = vld [vmem:[%s1] sm:$0xf]
  %v12 = vld [vmem:[%s0] sm:$0xff]
  %v13 = vld [vmem:[%s0 + $0x8] sm:$0xff]
  %v14 = vld [vmem:[%s0 + $0x10] sm:$0xff]
  %v15 = vld [vmem:[%s0 + $0x18] sm:$0xff]
  %v16 = vld [vmem:[%s0 + $0x20] sm:$0xff]
  %v17 = vld [vmem:[%s0 + $0x28] sm:$0xff]
  %v18 = vld [vmem:[%s0 + $0x30] sm:$0xff]
  %v19 = vld [vmem:[%s0 + $0x38] sm:$0xff]
  %v20 = vld [vmem:[%s0 + $0x40] sm:$0xff]
  %v21 = vld [vmem:[%s0 + $0x48] sm:$0xff]
  %v22 = vld [vmem:[%s0 + $0x50] sm:$0xff]
  %v23 = vld [vmem:[%s0 + $0x58] sm:$0xff]
  %v24 = vld [vmem:[%s0 + $0x60] sm:$0xff]
  %v25 = vld [vmem:[%s0 + $0x68] sm:$0xff]
  %v26 = vld [vmem:[%s0 + $0x70] sm:$0xff]
  %v27 = vld [vmem:[%s0 + $0x78] sm:$0xff]
  %v28 = vld [vmem:[%s0 + $0x80] sm:$0xff]
  %v29 = vld [vmem:[%s0 + $0x88] sm:$0xff]
  %v30 = vld [vmem:[%s0 + $0x90] sm:$0xff]
  %v31 = vld [vmem:[%s0 + $0x98] sm:$0xff]
  %v32 = vld [vmem:[%s0 + $0xa0] sm:$0xff]
  %v33 = vld [vmem:[%s0 + $0xa8] sm:$0xff]
  %v34 = vld [vmem:[%s0 + $0xb0] sm:$0xff]
  %v35 = vld [vmem:[%s0 + $0xb8] sm:$0xff]
  %v36 = vld [vmem:[%s0 + $0xc0] sm:$0xff]
  %v37 = vld [vmem:[%s0 + $0xc8] sm:$0xff]
  %v38 = vld [vmem:[%s0 + $0xd0] sm:$0xff]
  %v39 = vld [vmem:[%s0 + $0xd8] sm:$0xff]
  %v40 = vld [vmem:[%s0 + $0xe0] sm:$0xff]
  %v41 = vld [vmem:[%s0 + $0xe8] sm:$0xff]
  %v42 = vld [vmem:[%s0 + $0xf0] sm:$0xff]
  %v43 = vld [vmem:[%s0 + $0xf8] sm:$0xff]
  %v44 = vld [vmem:[%s0 + $0x100] sm:$0xff]
  %v45 = vld [vmem:[%s0 + $0x108] sm:$0xff]
  %v46 = vld [vmem:[%s0 + $0x110] sm:$0xff]
  %v47 = vld [vmem:[%s0 + $0x118] sm:$0xff]
  %v48 = vld [vmem:[%s0 + $0x120] sm:$0xff]
  %v49 = vld [vmem:[%s0 + $0x128] sm:$0xff]
  %v50 = vld [vmem:[%s0 + $0x130] sm:$0xff]
  %v51 = vld [vmem:[%s0 + $0x138] sm:$0xff]
  %v52 = vld [vmem:[%s0 + $0x140] sm:$0xff]
  %v53 = vld [vmem:[%s0 + $0x148] sm:$0xff]
  %v54 = vld [vmem:[%s0 + $0x150] sm:$0xff]
  %v55 = vld [vmem:[%s0 + $0x158] sm:$0xff]
  %v56 = vld [vmem:[%s0 + $0x160] sm:$0xff]
  %v57 = vld [vmem:[%s0 + $0x168] sm:$0xff]
  %v58 = vld [vmem:[%s0 + $0x170] sm:$0xff]
  %v59 = vld [vmem:[%s0 + $0x178] sm:$0xff]
  %v60 = vld [vmem:[%s0 + $0x180] sm:$0xff]
  %v61 = vld [vmem:[%s0 + $0x188] sm:$0xff]
  %v62 = vld [vmem:[%s0 + $0x190] sm:$0xff]
  %v63 = vld [vmem:[%s0 + $0x198] sm:$0xff]
  %v64 = vld [vmem:[%s0 + $0x1a0] sm:$0xff]
  %v65 = vld [vmem:[%s0 + $0x1a8] sm:$0xff]
  %v66 = vld [vmem:[%s0 + $0x1b0] sm:$0xff]
  %v67 = vld [vmem:[%s0 + $0x1b8] sm:$0xff]
  %v68 = vld [vmem:[%s0 + $0x1c0] sm:$0xff]
  %v69 = vld [vmem:[%s0 + $0x1c8] sm:$0xff]
  %v70 = vld [vmem:[%s0 + $0x1d0] sm:$0xff]
  %v71 = vld [vmem:[%s0 + $0x1d8] sm:$0xff]
  %v72 = vld [vmem:[%s0 + $0x1e0] sm:$0xff]
  %v73 = vld [vmem:[%s0 + $0x1e8] sm:$0xff]
  %v74 = vld [vmem:[%s0 + $0x1f0] sm:$0xff]
  %v75 = vld [vmem:[%s0 + $0x1f8] sm:$0xff]
  %v77 = vlaneseq
  %v78 = vshrl.u32 %v77, 7
  %v79 = vsub.s32 0, %v78
  %v80 = vrot.slane %v11, %v79
  %v81 = vlaneseq
  %v82 = vshrl.u32 %v81, 7
  %v83 = vsub.s32 1, %v82
  %v84 = vrot.slane %v11, %v83
  %v85 = vlaneseq
  %v86 = vshrl.u32 %v85, 7
  %v87 = vsub.s32 2, %v86
  %v88 = vrot.slane %v11, %v87
  %v89 = vlaneseq
  %v90 = vshrl.u32 %v89, 7
  %v91 = vsub.s32 3, %v90
  %v92 = vrot.slane %v11, %v91
  %97 = vmatprep.subr.mxu0 0.0
  %98 = vmatpush1.msra.mxu0 %v27
  %99 = vmatprep.subr.mxu0 0.0
  %100 = vmatpush1.msra.mxu0 %v26
  %101 = vmatprep.subr.mxu0 0.0
  %102 = vmatpush1.msra.mxu0 %v25
  %103 = vmatprep.subr.mxu0 0.0
  %104 = vmatpush1.msra.mxu0 %v24
  %105 = vmatprep.subr.mxu0 0.0
  %106 = vmatpush1.msra.mxu0 %v23
  %107 = vmatprep.subr.mxu0 0.0
  %108 = vmatpush1.msra.mxu0 %v22
  %109 = vmatprep.subr.mxu0 0.0
  %110 = vmatpush1.msra.mxu0 %v21
  %111 = vmatprep.subr.mxu0 0.0
  %112 = vmatpush1.msra.mxu0 %v20
  %113 = vmatprep.subr.mxu0 0.0
  %114 = vmatpush1.msra.mxu0 %v19
  %115 = vmatprep.subr.mxu0 0.0
  %116 = vmatpush1.msra.mxu0 %v18
  %117 = vmatprep.subr.mxu0 0.0
  %118 = vmatpush1.msra.mxu0 %v17
  %119 = vmatprep.subr.mxu0 0.0
  %120 = vmatpush1.msra.mxu0 %v16
  %121 = vmatprep.subr.mxu0 0.0
  %122 = vmatpush1.msra.mxu0 %v15
  %123 = vmatprep.subr.mxu0 0.0
  %124 = vmatpush1.msra.mxu0 %v14
  %125 = vmatprep.subr.mxu0 0.0
  %126 = vmatpush1.msra.mxu0 %v13
  %127 = vmatprep.subr.mxu0 0.0
  %128 = vmatpush1.msra.mxu0 %v12
  %129 = vmatprep.subr.mxu0 0.0
  %130 = vmatpush2.msra.mxu0 %v43
  %131 = vmatprep.subr.mxu0 0.0
  %132 = vmatpush2.msra.mxu0 %v42
  %133 = vmatprep.subr.mxu0 0.0
  %134 = vmatpush2.msra.mxu0 %v41
  %135 = vmatprep.subr.mxu0 0.0
  %136 = vmatpush2.msra.mxu0 %v40
  %137 = vmatprep.subr.mxu0 0.0
  %138 = vmatpush2.msra.mxu0 %v39
  %139 = vmatprep.subr.mxu0 0.0
  %140 = vmatpush2.msra.mxu0 %v38
  %141 = vmatprep.subr.mxu0 0.0
  %142 = vmatpush2.msra.mxu0 %v37
  %143 = vmatprep.subr.mxu0 0.0
  %144 = vmatpush2.msra.mxu0 %v36
  %145 = vmatprep.subr.mxu0 0.0
  %146 = vmatpush2.msra.mxu0 %v35
  %147 = vmatprep.subr.mxu0 0.0
  %148 = vmatpush2.msra.mxu0 %v34
  %149 = vmatprep.subr.mxu0 0.0
  %150 = vmatpush2.msra.mxu0 %v33
  %151 = vmatprep.subr.mxu0 0.0
  %152 = vmatpush2.msra.mxu0 %v32
  %153 = vmatprep.subr.mxu0 0.0
  %154 = vmatpush2.msra.mxu0 %v31
  %155 = vmatprep.subr.mxu0 0.0
  %156 = vmatpush2.msra.mxu0 %v30
  %157 = vmatprep.subr.mxu0 0.0
  %158 = vmatpush2.msra.mxu0 %v29
  %159 = vmatprep.subr.mxu0 0.0
  %160 = vmatpush2.msra.mxu0 %v28
  %161 = vmatprep.mubr.f32.mxu0 %v84
  %162 = vmatmul.mubr.f32.gmra.mxu0 %v80
  %v163 = vpop.f32.mrf.mxu0
  %v164 = vadd.f32 0.0, %v163
  %v165 = vpop.f32.mrf.mxu0
  %166 = vdwg.mxu0
  %167 = vmatprep.subr.mxu0 0.0
  %168 = vmatpush1.msra.mxu0 %v59
  %169 = vmatprep.subr.mxu0 0.0
  %170 = vmatpush1.msra.mxu0 %v58
  %171 = vmatprep.subr.mxu0 0.0
  %172 = vmatpush1.msra.mxu0 %v57
  %173 = vmatprep.subr.mxu0 0.0
  %174 = vmatpush1.msra.mxu0 %v56
  %175 = vmatprep.subr.mxu0 0.0
  %176 = vmatpush1.msra.mxu0 %v55
  %177 = vmatprep.subr.mxu0 0.0
  %178 = vmatpush1.msra.mxu0 %v54
  %179 = vmatprep.subr.mxu0 0.0
  %180 = vmatpush1.msra.mxu0 %v53
  %181 = vmatprep.subr.mxu0 0.0
  %182 = vmatpush1.msra.mxu0 %v52
  %183 = vmatprep.subr.mxu0 0.0
  %184 = vmatpush1.msra.mxu0 %v51
  %185 = vmatprep.subr.mxu0 0.0
  %186 = vmatpush1.msra.mxu0 %v50
  %187 = vmatprep.subr.mxu0 0.0
  %188 = vmatpush1.msra.mxu0 %v49
  %189 = vmatprep.subr.mxu0 0.0
  %190 = vmatpush1.msra.mxu0 %v48
  %191 = vmatprep.subr.mxu0 0.0
  %192 = vmatpush1.msra.mxu0 %v47
  %193 = vmatprep.subr.mxu0 0.0
  %194 = vmatpush1.msra.mxu0 %v46
  %195 = vmatprep.subr.mxu0 0.0
  %196 = vmatpush1.msra.mxu0 %v45
  %197 = vmatprep.subr.mxu0 0.0
  %198 = vmatpush1.msra.mxu0 %v44
  %199 = vmatprep.subr.mxu0 0.0
  %200 = vmatpush2.msra.mxu0 %v75
  %201 = vmatprep.subr.mxu0 0.0
  %202 = vmatpush2.msra.mxu0 %v74
  %203 = vmatprep.subr.mxu0 0.0
  %204 = vmatpush2.msra.mxu0 %v73
  %205 = vmatprep.subr.mxu0 0.0
  %206 = vmatpush2.msra.mxu0 %v72
  %207 = vmatprep.subr.mxu0 0.0
  %208 = vmatpush2.msra.mxu0 %v71
  %209 = vmatprep.subr.mxu0 0.0
  %210 = vmatpush2.msra.mxu0 %v70
  %211 = vmatprep.subr.mxu0 0.0
  %212 = vmatpush2.msra.mxu0 %v69
  %213 = vmatprep.subr.mxu0 0.0
  %214 = vmatpush2.msra.mxu0 %v68
  %215 = vmatprep.subr.mxu0 0.0
  %216 = vmatpush2.msra.mxu0 %v67
  %217 = vmatprep.subr.mxu0 0.0
  %218 = vmatpush2.msra.mxu0 %v66
  %219 = vmatprep.subr.mxu0 0.0
  %220 = vmatpush2.msra.mxu0 %v65
  %221 = vmatprep.subr.mxu0 0.0
  %222 = vmatpush2.msra.mxu0 %v64
  %223 = vmatprep.subr.mxu0 0.0
  %224 = vmatpush2.msra.mxu0 %v63
  %225 = vmatprep.subr.mxu0 0.0
  %226 = vmatpush2.msra.mxu0 %v62
  %227 = vmatprep.subr.mxu0 0.0
  %228 = vmatpush2.msra.mxu0 %v61
  %229 = vmatprep.subr.mxu0 0.0
  %230 = vmatpush2.msra.mxu0 %v60
  %231 = vmatprep.mubr.f32.mxu0 %v92
  %232 = vmatmul.mubr.f32.gmra.mxu0 %v88
  %v233 = vpop.f32.mrf.mxu0
  %v234 = vadd.f32 %v164, %v233
  %v235 = vpop.f32.mrf.mxu0
  %236 = vdwg.mxu0
  %237 = vst [vmem:[%s2] sm:$0x1] %v234
  // Predicated region
  $region10: #{decompose_free_forward.1} parent=0 // pred_check
    _
  $region11: #{decompose_free_forward.1} parent=0 // pred_check_branch
    %239 = sbr.rel (0) target = $region13
  $region12: #{decompose_free_forward.1} parent=0 // pred_region
    _
  $region13: #{decompose_free_forward.1} parent=0 // pred_fallthru
    _
  // Predicated region
  $region14: #{decompose_free_forward.1} parent=0 // pred_check
    _
  $region15: #{decompose_free_forward.1} parent=0 // pred_check_branch
    %241 = sbr.rel (0) target = $region17
  $region16: #{decompose_free_forward.1} parent=0 // pred_region
    _
  $region17: #{decompose_free_forward.1} parent=0 // pred_fallthru
    _

</llo_original>
